<compile_context>
chip_gen: v7x
topology: tpu7x:2x2x1
jax: 0.10.0
libtpu: 0.0.40
codegen_flags: <defaults>
</compile_context>

<pallas_src>
import functools

import jax
import jax.numpy as jnp
from jax.experimental import pallas as pl
from jax.experimental.pallas import tpu as pltpu

EPS = 1e-5
LANE = 128
# Default M tile target. Raise on v5e/v6e (128 MiB VMEM) at production widths.
DEFAULT_TILE_M = 512


def _round_up(a, b):
    return ((a + b - 1) // b) * b


def _choose_tile_m(M, target=DEFAULT_TILE_M):
    """Pick (tile_m, Mp). tile_m is a multiple of 128, <= target when possible,
    >=2 tiles whenever M spans more than one lane block, padding minimized."""
    n_blk = _round_up(M, LANE) // LANE
    if n_blk <= 1:
        return LANE, LANE
    tgt_blk = max(1, target // LANE)
    k = max(2, -(-n_blk // tgt_blk))          # number of tiles (>= 2)
    blocks_per_tile = -(-n_blk // k)
    tile = blocks_per_tile * LANE
    return tile, tile * k


def _pad_cols(a, target):
    pad = target - a.shape[-1]
    return a if pad == 0 else jnp.pad(a, ((0, 0), (0, pad)))


def _vmem_limit(per_step_bytes):
    # double-buffered operands + headroom; capped below v7x's 64 MiB physical.
    need = 2 * per_step_bytes + (4 << 20)
    return int(min(max(need, 32 << 20), 48 << 20))


# --------------------------------------------------------------------------
# Elementwise BN(eval)+ReLU kernel: h = relu(x*scale + shift), stored bf16.
# --------------------------------------------------------------------------
def _bn_relu_kernel(x_ref, s_ref, b_ref, o_ref):
    o_ref[...] = jnp.maximum(x_ref[...] * s_ref[...] + b_ref[...],
                             0.0).astype(o_ref.dtype)


def bn_relu_slab(x_slab, scale, shift, *, tile_m):
    """x_slab: (C, Mp) f32 -> (C, Mp) bf16."""
    C, Mp = x_slab.shape
    assert Mp % tile_m == 0
    per_step = C * tile_m * (x_slab.dtype.itemsize + 2) + 2 * C * 4
    return pl.pallas_call(
        _bn_relu_kernel,
        out_shape=jax.ShapeDtypeStruct((C, Mp), jnp.bfloat16),
        grid=(Mp // tile_m,),
        in_specs=[pl.BlockSpec((C, tile_m), lambda i: (0, i)),
                  pl.BlockSpec((C, 1), lambda i: (0, 0)),
                  pl.BlockSpec((C, 1), lambda i: (0, 0))],
        out_specs=pl.BlockSpec((C, tile_m), lambda i: (0, i)),
        compiler_params=pltpu.CompilerParams(
            dimension_semantics=("parallel",),
            vmem_limit_bytes=_vmem_limit(per_step)),
    )(x_slab, scale.reshape(C, 1), shift.reshape(C, 1))


# --------------------------------------------------------------------------
# Fused conv kernel:
#   out = [bn2+relu]( W @ patches ) [+ residual]
#   res = Ws @ patches[centre-tap rows]          (optional folded 1x1 shortcut)
# --------------------------------------------------------------------------
def _fused_conv_kernel(*refs, cin, has_post, has_shortcut, has_res):
    it = iter(refs)
    p_ref = next(it)                            # (KCin, tileM) bf16 patches
    w_ref = next(it)                            # (Cout, KCin) bf16
    post_s = next(it) if has_post else None     # (Cout, 1) f32
    post_b = next(it) if has_post else None     # (Cout, 1) f32
    ws_ref = next(it) if has_shortcut else None  # (Cout, Cin) bf16
    r_ref = next(it) if has_res else None       # (Cout, tileM) residual
    o_ref = next(it)                            # (Cout, tileM) main output
    res_ref = next(it) if has_shortcut else None  # (Cout, tileM) shortcut out

    x = p_ref[...]                              # bf16 patch tile

    # single MXU matmul per tile; bf16 operands, f32 accumulation
    acc = jnp.dot(w_ref[...], x, preferred_element_type=jnp.float32)

    if has_post:
        # fused BatchNorm(eval) + ReLU epilogue (f32 math on the accumulator)
        acc = jnp.maximum(acc * post_s[...] + post_b[...], 0.0)
    if has_res:
        acc = acc + r_ref[...].astype(jnp.float32)
    o_ref[...] = acc.astype(o_ref.dtype)

    if has_shortcut:
        # 1x1 shortcut conv: its inputs are exactly the centre-tap rows of the
        # (3x3, pad=1) patch tile, for any stride.
        centre = x[4 * cin:5 * cin, :]
        res = jnp.dot(ws_ref[...], centre, preferred_element_type=jnp.float32)
        res_ref[...] = res.astype(res_ref.dtype)


def fused_conv(patches, w_t, *, post=None, shortcut_w=None, residual=None,
               out_dtype=jnp.float32, res_dtype=jnp.bfloat16, tile_m):
    """patches: (KCin, Mp) bf16; w_t: (Cout, KCin) bf16.
    post: optional (scale, shift) f32 per-Cout epilogue (BN+ReLU).
    shortcut_w: optional (Cout, Cin) bf16 -> second output (shortcut conv).
    residual: optional (Cout, Mp) slab added to the main output.
    Returns (Cout, Mp) [out_dtype], or (out, res) if shortcut_w given."""
    KCin, Mp = patches.shape
    Cout = w_t.shape[0]
    assert Mp % tile_m == 0

    in_specs = [
        pl.BlockSpec((KCin, tile_m), lambda i: (0, i)),   # patch tile
        pl.BlockSpec((Cout, KCin), lambda i: (0, 0)),     # weights (resident)
    ]
    args = [patches, w_t]
    per_step = (patches.dtype.itemsize * KCin * tile_m
                + w_t.dtype.itemsize * Cout * KCin
                + jnp.dtype(out_dtype).itemsize * Cout * tile_m)
    if post is not None:
        s, b = post
        in_specs += [pl.BlockSpec((Cout, 1), lambda i: (0, 0))] * 2
        args += [s.reshape(Cout, 1), b.reshape(Cout, 1)]
        per_step += 2 * Cout * 4
    if shortcut_w is not None:
        Cin = shortcut_w.shape[1]
        in_specs.append(pl.BlockSpec((Cout, Cin), lambda i: (0, 0)))
        args.append(shortcut_w)
        per_step += (shortcut_w.dtype.itemsize * Cout * Cin
                     + jnp.dtype(res_dtype).itemsize * Cout * tile_m)
    if residual is not None:
        in_specs.append(pl.BlockSpec((Cout, tile_m), lambda i: (0, i)))
        args.append(residual)
        per_step += residual.dtype.itemsize * Cout * tile_m

    out_shape = jax.ShapeDtypeStruct((Cout, Mp), out_dtype)
    out_specs = pl.BlockSpec((Cout, tile_m), lambda i: (0, i))
    if shortcut_w is not None:
        out_shape = (out_shape, jax.ShapeDtypeStruct((Cout, Mp), res_dtype))
        out_specs = (out_specs, pl.BlockSpec((Cout, tile_m), lambda i: (0, i)))

    kernel = functools.partial(
        _fused_conv_kernel,
        cin=(KCin // 9) if shortcut_w is not None else 0,
        has_post=post is not None,
        has_shortcut=shortcut_w is not None,
        has_res=residual is not None)

    return pl.pallas_call(
        kernel,
        out_shape=out_shape,
        grid=(Mp // tile_m,),
        in_specs=in_specs,
        out_specs=out_specs,
        compiler_params=pltpu.CompilerParams(
            dimension_semantics=("parallel",),
            vmem_limit_bytes=_vmem_limit(per_step)),
    )(*args)


# --------------------------------------------------------------------------
# JAX glue: im2col patch slab in channels-first layout (zero pad + stride)
# --------------------------------------------------------------------------
def extract_patches_cf(x, ksize, stride, padding):
    """x: (C, N, H, W) -> (K*K*C, N*Ho*Wo) slab, rows = tap-major, channel-minor."""
    C, N, H, W = x.shape
    Ho = (H + 2 * padding - ksize) // stride + 1
    Wo = (W + 2 * padding - ksize) // stride + 1
    if padding > 0:
        xp = jnp.pad(x, ((0, 0), (0, 0), (padding, padding),
                         (padding, padding)))
    else:
        xp = x
    taps = []
    for kh in range(ksize):
        for kw in range(ksize):
            sl = xp[:, :,
                    kh:kh + (Ho - 1) * stride + 1:stride,
                    kw:kw + (Wo - 1) * stride + 1:stride]
            taps.append(sl.reshape(C, N * Ho * Wo))
    return jnp.concatenate(taps, axis=0), (N, Ho, Wo)


def oihw_to_slab(w):
    """(O, I, KH, KW) -> (O, KH*KW*I) bf16; columns match the patch row order."""
    O, I, KH, KW = w.shape
    return jnp.transpose(w, (0, 2, 3, 1)).reshape(O, KH * KW * I).astype(jnp.bfloat16)


# --------------------------------------------------------------------------
# Parameter construction (deterministic, in-script)
# --------------------------------------------------------------------------
def init_basic_block(key, cin, cout):
    ks = jax.random.split(key, 11)

    def conv_w(k, o, i, kh, kw):
        fan = i * kh * kw
        return jax.random.normal(k, (o, i, kh, kw), jnp.float32) * (2.0 / fan) ** 0.5

    p = {
        "bn1_gamma": 1.0 + 0.1 * jax.random.normal(ks[0], (cin,), jnp.float32),
        "bn1_beta": 0.1 * jax.random.normal(ks[1], (cin,), jnp.float32),
        "bn1_mean": 0.1 * jax.random.normal(ks[2], (cin,), jnp.float32),
        "bn1_var": jnp.abs(1.0 + 0.1 * jax.random.normal(ks[3], (cin,), jnp.float32)),
        "w1": conv_w(ks[4], cout, cin, 3, 3),
        "bn2_gamma": 1.0 + 0.1 * jax.random.normal(ks[5], (cout,), jnp.float32),
        "bn2_beta": 0.1 * jax.random.normal(ks[6], (cout,), jnp.float32),
        "bn2_mean": 0.1 * jax.random.normal(ks[7], (cout,), jnp.float32),
        "bn2_var": jnp.abs(1.0 + 0.1 * jax.random.normal(ks[8], (cout,), jnp.float32)),
        "w2": conv_w(ks[9], cout, cout, 3, 3),
        "ws": conv_w(ks[10], cout, cin, 1, 1),
    }
    # Precomputed eval-mode BN affine: y = x*scale + shift
    p["bn1_scale"] = p["bn1_gamma"] / jnp.sqrt(p["bn1_var"] + EPS)
    p["bn1_shift"] = p["bn1_beta"] - p["bn1_mean"] * p["bn1_scale"]
    p["bn2_scale"] = p["bn2_gamma"] / jnp.sqrt(p["bn2_var"] + EPS)
    p["bn2_shift"] = p["bn2_beta"] - p["bn2_mean"] * p["bn2_scale"]
    # matmul-form conv weights (Cout, K*Cin), bf16 for the MXU
    p["w1_t"] = oihw_to_slab(p["w1"])
    p["w2_t"] = oihw_to_slab(p["w2"])
    p["ws_t"] = oihw_to_slab(p["ws"])
    return p


def init_network_block(key, nb_layers, in_planes, out_planes):
    keys = jax.random.split(key, nb_layers)
    params, meta = [], []
    for i in range(nb_layers):
        cin = in_planes if i == 0 else out_planes
        params.append(init_basic_block(keys[i], cin, out_planes))
        meta.append({"equal": cin == out_planes})
    return params, meta


# --------------------------------------------------------------------------
# Forward pass built on the fused Pallas conv kernels
# --------------------------------------------------------------------------
def basic_block_forward(x, p, stride, equal_in_out):
    """x: (Cin, N, H, W) f32 -> (Cout, N, Ho, Wo) f32."""
    Cin, N, H, W = x.shape
    Cout = p["w1_t"].shape[0]
    if equal_in_out:
        assert stride == 1, "equalInOut residual requires stride == 1"

    # h = relu(bn1(x)), computed once per pixel, stored bf16
    Min = N * H * W
    tile_in, Mp_in = _choose_tile_m(Min)
    x_slab = _pad_cols(x.reshape(Cin, Min), Mp_in)          # f32
    h_slab = bn_relu_slab(x_slab, p["bn1_scale"], p["bn1_shift"],
                          tile_m=tile_in)                    # bf16
    h = h_slab[:, :Min].reshape(Cin, N, H, W)

    # conv1 (3x3, stride, pad=1): bn2+relu fused as epilogue; the 1x1 shortcut
    # conv (non-equal case) is folded into the same kernel via the centre-tap
    # rows of the patch tile.
    patches1, (_, Ho, Wo) = extract_patches_cf(h, 3, stride, 1)   # bf16
    M = N * Ho * Wo
    tile_m, Mp = _choose_tile_m(M)
    patches1 = _pad_cols(patches1, Mp)

    if equal_in_out:
        out1 = fused_conv(patches1, p["w1_t"],
                          post=(p["bn2_scale"], p["bn2_shift"]),
                          out_dtype=jnp.bfloat16, tile_m=tile_m)
        residual = x_slab                                    # identity, f32
    else:
        out1, residual = fused_conv(patches1, p["w1_t"],
                                    post=(p["bn2_scale"], p["bn2_shift"]),
                                    shortcut_w=p["ws_t"],
                                    out_dtype=jnp.bfloat16,
                                    res_dtype=jnp.bfloat16, tile_m=tile_m)

    # TODO(synk): F.dropout with drop_rate > 0 (training mode) not implemented;
    # drop_rate defaults to 0.0, so forward is identity here.

    # conv2 (3x3, stride=1, pad=1) with the residual add fused as epilogue
    out_cf = out1[:, :M].reshape(Cout, N, Ho, Wo)            # bf16
    patches2, _ = extract_patches_cf(out_cf, 3, 1, 1)        # bf16
    patches2 = _pad_cols(patches2, Mp)
    y = fused_conv(patches2, p["w2_t"], residual=residual,
                   out_dtype=jnp.float32, tile_m=tile_m)
    return y[:, :M].reshape(Cout, N, Ho, Wo)


@functools.partial(jax.jit, static_argnames=("strides", "equals"))
def network_block_forward(x_cf, params, strides, equals):
    h = x_cf
    for p, s, eq in zip(params, strides, equals):
        h = basic_block_forward(h, p, s, eq)
    return h


# --------------------------------------------------------------------------
# Pure-JAX reference (mirrors the PyTorch module, eval mode, NCHW, f32)
# --------------------------------------------------------------------------
def _ref_conv(x, w_oihw, stride, padding):
    return jax.lax.conv_general_dilated(
        x, w_oihw, window_strides=(stride, stride),
        padding=[(padding, padding), (padding, padding)],
        dimension_numbers=("NCHW", "OIHW", "NCHW"))


def _ref_bn_relu(x, scale, shift):
    return jnp.maximum(x * scale[None, :, None, None]
                       + shift[None, :, None, None], 0.0)


def ref_basic_block(x, p, stride, equal_in_out):
    h = _ref_bn_relu(x, p["bn1_scale"], p["bn1_shift"])
    out = _ref_conv(h, p["w1"], stride, 1)
    out = _ref_bn_relu(out, p["bn2_scale"], p["bn2_shift"])
    out = _ref_conv(out, p["w2"], 1, 1)
    residual = x if equal_in_out else _ref_conv(h, p["ws"], stride, 0)
    return residual + out


def ref_network_block(x_nchw, params, strides, equals):
    h = x_nchw
    for p, s, eq in zip(params, strides, equals):
        h = ref_basic_block(h, p, s, eq)
    return h


# --------------------------------------------------------------------------
if __name__ == "__main__":
    key = jax.random.PRNGKey(0)
    k_x, k_p = jax.random.split(key)

    # NetworkBlock(nb_layers=2, in_planes=4, out_planes=8, block=BasicBlock, stride=2)
    nb_layers, in_planes, out_planes, first_stride = 2, 4, 8, 2

    # PyTorch-style NCHW input, small shapes.
    x_nchw = jax.random.normal(k_x, (2, in_planes, 16, 16), jnp.float32)

    params, meta = init_network_block(k_p, nb_layers, in_planes, out_planes)
    strides = tuple(first_stride if i == 0 else 1 for i in range(nb_layers))
    equals = tuple(m["equal"] for m in meta)

    # kernels run in channels-first (C, N, H, W) layout
    x_cf = jnp.transpose(x_nchw, (1, 0, 2, 3))
    out_cf = jax.block_until_ready(
        network_block_forward(x_cf, params, strides, equals))
    out_nchw = jnp.transpose(out_cf, (1, 0, 2, 3))

    ref = jax.block_until_ready(
        ref_network_block(x_nchw, params, strides, equals))

    assert out_nchw.shape == ref.shape, (out_nchw.shape, ref.shape)
    err = float(jnp.max(jnp.abs(out_nchw - ref)))
    # bf16 activations / MXU operands vs f32 reference across 4 stacked convs
    assert jnp.allclose(out_nchw, ref, atol=5e-2, rtol=5e-2), (
        "max abs err = %g" % err)

    print("KERNEL_OK")
</pallas_src>

<mosaic_0001>
module attributes {stable_mosaic.version = 11 : i64} {
  func.func @_bn_relu_kernel(%arg0: i32, %arg1: memref<4x256xf32, #tpu.memory_space<vmem>>, %arg2: memref<4x1xf32, #tpu.memory_space<vmem>>, %arg3: memref<4x1xf32, #tpu.memory_space<vmem>>, %arg4: memref<4x256xbf16, #tpu.memory_space<vmem>>) attributes {dimension_semantics = [#tpu.dimension_semantics<parallel>], iteration_bounds = array<i64: 2>, scalar_prefetch = 0 : i64, scratch_operands = 0 : i64, tpu.core_type = #tpu.core_type<tc>, window_params = [{transform_indices = @transform_0, window_bounds = array<i64: 4, 256>}, {pipeline_mode = #tpu.pipeline_mode<synchronous>, transform_indices = @transform_1, window_bounds = array<i64: 4, 1>}, {pipeline_mode = #tpu.pipeline_mode<synchronous>, transform_indices = @transform_2, window_bounds = array<i64: 4, 1>}, {transform_indices = @transform_3, window_bounds = array<i64: 4, 256>}]} {
    %c0 = arith.constant 0 : index
    %c0_0 = arith.constant 0 : index
    %0 = vector.load %arg1[%c0, %c0_0] : memref<4x256xf32, #tpu.memory_space<vmem>>, vector<4x256xf32>
    %c0_1 = arith.constant 0 : index
    %c0_2 = arith.constant 0 : index
    %1 = vector.load %arg2[%c0_1, %c0_2] : memref<4x1xf32, #tpu.memory_space<vmem>>, vector<4x1xf32>
    %2 = vector.broadcast %1 : vector<4x1xf32> to vector<4x256xf32>
    %3 = arith.mulf %0, %2 : vector<4x256xf32>
    %c0_3 = arith.constant 0 : index
    %c0_4 = arith.constant 0 : index
    %4 = vector.load %arg3[%c0_3, %c0_4] : memref<4x1xf32, #tpu.memory_space<vmem>>, vector<4x1xf32>
    %5 = vector.broadcast %4 : vector<4x1xf32> to vector<4x256xf32>
    %6 = arith.addf %3, %5 : vector<4x256xf32>
    %cst = arith.constant 0.000000e+00 : f32
    %7 = vector.broadcast %cst : f32 to vector<4x256xf32>
    %8 = arith.maximumf %6, %7 : vector<4x256xf32>
    %9 = arith.truncf %8 : vector<4x256xf32> to vector<4x256xbf16>
    %c0_5 = arith.constant 0 : index
    %c0_6 = arith.constant 0 : index
    %10 = vector.load %arg4[%c0_5, %c0_6] : memref<4x256xbf16, #tpu.memory_space<vmem>>, vector<4x256xbf16>
    tpu.vector_store %arg4[%c0_5, %c0_6], %9 {strides = array<i32>} : memref<4x256xbf16, #tpu.memory_space<vmem>>, vector<4x256xbf16>,
    return
  }
  func.func @transform_0(%arg0: i32) -> (i32, i32) {
    %c0_i32 = arith.constant 0 : i32
    %c0_i32_0 = arith.constant 0 : i32
    return %c0_i32, %arg0 : i32, i32
  }
  func.func @transform_1(%arg0: i32) -> (i32, i32) {
    %c0_i32 = arith.constant 0 : i32
    %c0_i32_0 = arith.constant 0 : i32
    %c0_i32_1 = arith.constant 0 : i32
    return %c0_i32, %c0_i32_0 : i32, i32
  }
  func.func @transform_2(%arg0: i32) -> (i32, i32) {
    %c0_i32 = arith.constant 0 : i32
    %c0_i32_0 = arith.constant 0 : i32
    %c0_i32_1 = arith.constant 0 : i32
    return %c0_i32, %c0_i32_0 : i32, i32
  }
  func.func @transform_3(%arg0: i32) -> (i32, i32) {
    %c0_i32 = arith.constant 0 : i32
    %c0_i32_0 = arith.constant 0 : i32
    return %c0_i32, %arg0 : i32, i32
  }
}

module attributes {stable_mosaic.version = 11 : i64} {
  func.func @_fused_conv_kernel(%arg0: i32, %arg1: memref<36x128xbf16, #tpu.memory_space<vmem>>, %arg2: memref<8x36xbf16, #tpu.memory_space<vmem>>, %arg3: memref<8x1xf32, #tpu.memory_space<vmem>>, %arg4: memref<8x1xf32, #tpu.memory_space<vmem>>, %arg5: memref<8x4xbf16, #tpu.memory_space<vmem>>, %arg6: memref<8x128xbf16, #tpu.memory_space<vmem>>, %arg7: memref<8x128xbf16, #tpu.memory_space<vmem>>) attributes {dimension_semantics = [#tpu.dimension_semantics<parallel>], iteration_bounds = array<i64: 1>, scalar_prefetch = 0 : i64, scratch_operands = 0 : i64, tpu.core_type = #tpu.core_type<tc>, window_params = [{transform_indices = @transform_0, window_bounds = array<i64: 36, 128>}, {pipeline_mode = #tpu.pipeline_mode<synchronous>, transform_indices = @transform_1, window_bounds = array<i64: 8, 36>}, {pipeline_mode = #tpu.pipeline_mode<synchronous>, transform_indices = @transform_2, window_bounds = array<i64: 8, 1>}, {pipeline_mode = #tpu.pipeline_mode<synchronous>, transform_indices = @transform_3, window_bounds = array<i64: 8, 1>}, {pipeline_mode = #tpu.pipeline_mode<synchronous>, transform_indices = @transform_4, window_bounds = array<i64: 8, 4>}, {transform_indices = @transform_5, window_bounds = array<i64: 8, 128>}, {transform_indices = @transform_6, window_bounds = array<i64: 8, 128>}]} {
    %c0 = arith.constant 0 : index
    %c0_0 = arith.constant 0 : index
    %0 = vector.load %arg1[%c0, %c0_0] : memref<36x128xbf16, #tpu.memory_space<vmem>>, vector<36x128xbf16>
    %c0_1 = arith.constant 0 : index
    %c0_2 = arith.constant 0 : index
    %1 = vector.load %arg2[%c0_1, %c0_2] : memref<8x36xbf16, #tpu.memory_space<vmem>>, vector<8x36xbf16>
    %cst = arith.constant dense<0.000000e+00> : vector<8x128xf32>
    %2 = tpu.matmul %1, %0, %cst {dimension_numbers = #tpu.dot_dimension_numbers<[1], [0], [0], [1], [0, 0, 1, 1], [], []>} : vector<8x36xbf16>, vector<36x128xbf16>, vector<8x128xf32> -> vector<8x128xf32>
    %c0_3 = arith.constant 0 : index
    %c0_4 = arith.constant 0 : index
    %3 = vector.load %arg3[%c0_3, %c0_4] : memref<8x1xf32, #tpu.memory_space<vmem>>, vector<8x1xf32>
    %4 = vector.broadcast %3 : vector<8x1xf32> to vector<8x128xf32>
    %5 = arith.mulf %2, %4 : vector<8x128xf32>
    %c0_5 = arith.constant 0 : index
    %c0_6 = arith.constant 0 : index
    %6 = vector.load %arg4[%c0_5, %c0_6] : memref<8x1xf32, #tpu.memory_space<vmem>>, vector<8x1xf32>
    %7 = vector.broadcast %6 : vector<8x1xf32> to vector<8x128xf32>
    %8 = arith.addf %5, %7 : vector<8x128xf32>
    %cst_7 = arith.constant 0.000000e+00 : f32
    %9 = vector.broadcast %cst_7 : f32 to vector<8x128xf32>
    %10 = arith.maximumf %8, %9 : vector<8x128xf32>
    %11 = arith.truncf %10 : vector<8x128xf32> to vector<8x128xbf16>
    %c0_8 = arith.constant 0 : index
    %c0_9 = arith.constant 0 : index
    %12 = vector.load %arg6[%c0_8, %c0_9] : memref<8x128xbf16, #tpu.memory_space<vmem>>, vector<8x128xbf16>
    tpu.vector_store %arg6[%c0_8, %c0_9], %11 {strides = array<i32>} : memref<8x128xbf16, #tpu.memory_space<vmem>>, vector<8x128xbf16>,
    %13 = vector.extract_strided_slice %0 {offsets = [16, 0], sizes = [4, 128], strides = [1, 1]} : vector<36x128xbf16> to vector<4x128xbf16>
    %c0_10 = arith.constant 0 : index
    %c0_11 = arith.constant 0 : index
    %14 = vector.load %arg5[%c0_10, %c0_11] : memref<8x4xbf16, #tpu.memory_space<vmem>>, vector<8x4xbf16>
    %cst_12 = arith.constant dense<0.000000e+00> : vector<8x128xf32>
    %15 = tpu.matmul %14, %13, %cst_12 {dimension_numbers = #tpu.dot_dimension_numbers<[1], [0], [0], [1], [0, 0, 1, 1], [], []>} : vector<8x4xbf16>, vector<4x128xbf16>, vector<8x128xf32> -> vector<8x128xf32>
    %16 = arith.truncf %15 : vector<8x128xf32> to vector<8x128xbf16>
    %c0_13 = arith.constant 0 : index
    %c0_14 = arith.constant 0 : index
    %17 = vector.load %arg7[%c0_13, %c0_14] : memref<8x128xbf16, #tpu.memory_space<vmem>>, vector<8x128xbf16>
    tpu.vector_store %arg7[%c0_13, %c0_14], %16 {strides = array<i32>} : memref<8x128xbf16, #tpu.memory_space<vmem>>, vector<8x128xbf16>,
    return
  }
  func.func @transform_0(%arg0: i32) -> (i32, i32) {
    %c0_i32 = arith.constant 0 : i32
    %c0_i32_0 = arith.constant 0 : i32
    return %c0_i32, %arg0 : i32, i32
  }
  func.func @transform_1(%arg0: i32) -> (i32, i32) {
    %c0_i32 = arith.constant 0 : i32
    %c0_i32_0 = arith.constant 0 : i32
    %c0_i32_1 = arith.constant 0 : i32
    return %c0_i32, %c0_i32_0 : i32, i32
  }
  func.func @transform_2(%arg0: i32) -> (i32, i32) {
    %c0_i32 = arith.constant 0 : i32
    %c0_i32_0 = arith.constant 0 : i32
    %c0_i32_1 = arith.constant 0 : i32
    return %c0_i32, %c0_i32_0 : i32, i32
  }
  func.func @transform_3(%arg0: i32) -> (i32, i32) {
    %c0_i32 = arith.constant 0 : i32
    %c0_i32_0 = arith.constant 0 : i32
    %c0_i32_1 = arith.constant 0 : i32
    return %c0_i32, %c0_i32_0 : i32, i32
  }
  func.func @transform_4(%arg0: i32) -> (i32, i32) {
    %c0_i32 = arith.constant 0 : i32
    %c0_i32_0 = arith.constant 0 : i32
    %c0_i32_1 = arith.constant 0 : i32
    return %c0_i32, %c0_i32_0 : i32, i32
  }
  func.func @transform_5(%arg0: i32) -> (i32, i32) {
    %c0_i32 = arith.constant 0 : i32
    %c0_i32_0 = arith.constant 0 : i32
    return %c0_i32, %arg0 : i32, i32
  }
  func.func @transform_6(%arg0: i32) -> (i32, i32) {
    %c0_i32 = arith.constant 0 : i32
    %c0_i32_0 = arith.constant 0 : i32
    return %c0_i32, %arg0 : i32, i32
  }
}

module attributes {stable_mosaic.version = 11 : i64} {
  func.func @_fused_conv_kernel(%arg0: i32, %arg1: memref<72x128xbf16, #tpu.memory_space<vmem>>, %arg2: memref<8x72xbf16, #tpu.memory_space<vmem>>, %arg3: memref<8x128xbf16, #tpu.memory_space<vmem>>, %arg4: memref<8x128xf32, #tpu.memory_space<vmem>>) attributes {dimension_semantics = [#tpu.dimension_semantics<parallel>], iteration_bounds = array<i64: 1>, scalar_prefetch = 0 : i64, scratch_operands = 0 : i64, tpu.core_type = #tpu.core_type<tc>, window_params = [{transform_indices = @transform_0, window_bounds = array<i64: 72, 128>}, {pipeline_mode = #tpu.pipeline_mode<synchronous>, transform_indices = @transform_1, window_bounds = array<i64: 8, 72>}, {transform_indices = @transform_2, window_bounds = array<i64: 8, 128>}, {transform_indices = @transform_3, window_bounds = array<i64: 8, 128>}]} {
    %c0 = arith.constant 0 : index
    %c0_0 = arith.constant 0 : index
    %0 = vector.load %arg1[%c0, %c0_0] : memref<72x128xbf16, #tpu.memory_space<vmem>>, vector<72x128xbf16>
    %c0_1 = arith.constant 0 : index
    %c0_2 = arith.constant 0 : index
    %1 = vector.load %arg2[%c0_1, %c0_2] : memref<8x72xbf16, #tpu.memory_space<vmem>>, vector<8x72xbf16>
    %cst = arith.constant dense<0.000000e+00> : vector<8x128xf32>
    %2 = tpu.matmul %1, %0, %cst {dimension_numbers = #tpu.dot_dimension_numbers<[1], [0], [0], [1], [0, 0, 1, 1], [], []>} : vector<8x72xbf16>, vector<72x128xbf16>, vector<8x128xf32> -> vector<8x128xf32>
    %c0_3 = arith.constant 0 : index
    %c0_4 = arith.constant 0 : index
    %3 = vector.load %arg3[%c0_3, %c0_4] : memref<8x128xbf16, #tpu.memory_space<vmem>>, vector<8x128xbf16>
    %4 = arith.extf %3 : vector<8x128xbf16> to vector<8x128xf32>
    %5 = arith.addf %2, %4 : vector<8x128xf32>
    %c0_5 = arith.constant 0 : index
    %c0_6 = arith.constant 0 : index
    %6 = vector.load %arg4[%c0_5, %c0_6] : memref<8x128xf32, #tpu.memory_space<vmem>>, vector<8x128xf32>
    tpu.vector_store %arg4[%c0_5, %c0_6], %5 {strides = array<i32>} : memref<8x128xf32, #tpu.memory_space<vmem>>, vector<8x128xf32>,
    return
  }
  func.func @transform_0(%arg0: i32) -> (i32, i32) {
    %c0_i32 = arith.constant 0 : i32
    %c0_i32_0 = arith.constant 0 : i32
    return %c0_i32, %arg0 : i32, i32
  }
  func.func @transform_1(%arg0: i32) -> (i32, i32) {
    %c0_i32 = arith.constant 0 : i32
    %c0_i32_0 = arith.constant 0 : i32
    %c0_i32_1 = arith.constant 0 : i32
    return %c0_i32, %c0_i32_0 : i32, i32
  }
  func.func @transform_2(%arg0: i32) -> (i32, i32) {
    %c0_i32 = arith.constant 0 : i32
    %c0_i32_0 = arith.constant 0 : i32
    return %c0_i32, %arg0 : i32, i32
  }
  func.func @transform_3(%arg0: i32) -> (i32, i32) {
    %c0_i32 = arith.constant 0 : i32
    %c0_i32_0 = arith.constant 0 : i32
    return %c0_i32, %arg0 : i32, i32
  }
}

module attributes {stable_mosaic.version = 11 : i64} {
  func.func @_bn_relu_kernel(%arg0: i32, %arg1: memref<8x128xf32, #tpu.memory_space<vmem>>, %arg2: memref<8x1xf32, #tpu.memory_space<vmem>>, %arg3: memref<8x1xf32, #tpu.memory_space<vmem>>, %arg4: memref<8x128xbf16, #tpu.memory_space<vmem>>) attributes {dimension_semantics = [#tpu.dimension_semantics<parallel>], iteration_bounds = array<i64: 1>, scalar_prefetch = 0 : i64, scratch_operands = 0 : i64, tpu.core_type = #tpu.core_type<tc>, window_params = [{transform_indices = @transform_0, window_bounds = array<i64: 8, 128>}, {pipeline_mode = #tpu.pipeline_mode<synchronous>, transform_indices = @transform_1, window_bounds = array<i64: 8, 1>}, {pipeline_mode = #tpu.pipeline_mode<synchronous>, transform_indices = @transform_2, window_bounds = array<i64: 8, 1>}, {transform_indices = @transform_3, window_bounds = array<i64: 8, 128>}]} {
    %c0 = arith.constant 0 : index
    %c0_0 = arith.constant 0 : index
    %0 = vector.load %arg1[%c0, %c0_0] : memref<8x128xf32, #tpu.memory_space<vmem>>, vector<8x128xf32>
    %c0_1 = arith.constant 0 : index
    %c0_2 = arith.constant 0 : index
    %1 = vector.load %arg2[%c0_1, %c0_2] : memref<8x1xf32, #tpu.memory_space<vmem>>, vector<8x1xf32>
    %2 = vector.broadcast %1 : vector<8x1xf32> to vector<8x128xf32>
    %3 = arith.mulf %0, %2 : vector<8x128xf32>
    %c0_3 = arith.constant 0 : index
    %c0_4 = arith.constant 0 : index
    %4 = vector.load %arg3[%c0_3, %c0_4] : memref<8x1xf32, #tpu.memory_space<vmem>>, vector<8x1xf32>
    %5 = vector.broadcast %4 : vector<8x1xf32> to vector<8x128xf32>
    %6 = arith.addf %3, %5 : vector<8x128xf32>
    %cst = arith.constant 0.000000e+00 : f32
    %7 = vector.broadcast %cst : f32 to vector<8x128xf32>
    %8 = arith.maximumf %6, %7 : vector<8x128xf32>
    %9 = arith.truncf %8 : vector<8x128xf32> to vector<8x128xbf16>
    %c0_5 = arith.constant 0 : index
    %c0_6 = arith.constant 0 : index
    %10 = vector.load %arg4[%c0_5, %c0_6] : memref<8x128xbf16, #tpu.memory_space<vmem>>, vector<8x128xbf16>
    tpu.vector_store %arg4[%c0_5, %c0_6], %9 {strides = array<i32>} : memref<8x128xbf16, #tpu.memory_space<vmem>>, vector<8x128xbf16>,
    return
  }
  func.func @transform_0(%arg0: i32) -> (i32, i32) {
    %c0_i32 = arith.constant 0 : i32
    %c0_i32_0 = arith.constant 0 : i32
    return %c0_i32, %arg0 : i32, i32
  }
  func.func @transform_1(%arg0: i32) -> (i32, i32) {
    %c0_i32 = arith.constant 0 : i32
    %c0_i32_0 = arith.constant 0 : i32
    %c0_i32_1 = arith.constant 0 : i32
    return %c0_i32, %c0_i32_0 : i32, i32
  }
  func.func @transform_2(%arg0: i32) -> (i32, i32) {
    %c0_i32 = arith.constant 0 : i32
    %c0_i32_0 = arith.constant 0 : i32
    %c0_i32_1 = arith.constant 0 : i32
    return %c0_i32, %c0_i32_0 : i32, i32
  }
  func.func @transform_3(%arg0: i32) -> (i32, i32) {
    %c0_i32 = arith.constant 0 : i32
    %c0_i32_0 = arith.constant 0 : i32
    return %c0_i32, %arg0 : i32, i32
  }
}

module attributes {stable_mosaic.version = 11 : i64} {
  func.func @_fused_conv_kernel(%arg0: i32, %arg1: memref<72x128xbf16, #tpu.memory_space<vmem>>, %arg2: memref<8x72xbf16, #tpu.memory_space<vmem>>, %arg3: memref<8x1xf32, #tpu.memory_space<vmem>>, %arg4: memref<8x1xf32, #tpu.memory_space<vmem>>, %arg5: memref<8x128xbf16, #tpu.memory_space<vmem>>) attributes {dimension_semantics = [#tpu.dimension_semantics<parallel>], iteration_bounds = array<i64: 1>, scalar_prefetch = 0 : i64, scratch_operands = 0 : i64, tpu.core_type = #tpu.core_type<tc>, window_params = [{transform_indices = @transform_0, window_bounds = array<i64: 72, 128>}, {pipeline_mode = #tpu.pipeline_mode<synchronous>, transform_indices = @transform_1, window_bounds = array<i64: 8, 72>}, {pipeline_mode = #tpu.pipeline_mode<synchronous>, transform_indices = @transform_2, window_bounds = array<i64: 8, 1>}, {pipeline_mode = #tpu.pipeline_mode<synchronous>, transform_indices = @transform_3, window_bounds = array<i64: 8, 1>}, {transform_indices = @transform_4, window_bounds = array<i64: 8, 128>}]} {
    %c0 = arith.constant 0 : index
    %c0_0 = arith.constant 0 : index
    %0 = vector.load %arg1[%c0, %c0_0] : memref<72x128xbf16, #tpu.memory_space<vmem>>, vector<72x128xbf16>
    %c0_1 = arith.constant 0 : index
    %c0_2 = arith.constant 0 : index
    %1 = vector.load %arg2[%c0_1, %c0_2] : memref<8x72xbf16, #tpu.memory_space<vmem>>, vector<8x72xbf16>
    %cst = arith.constant dense<0.000000e+00> : vector<8x128xf32>
    %2 = tpu.matmul %1, %0, %cst {dimension_numbers = #tpu.dot_dimension_numbers<[1], [0], [0], [1], [0, 0, 1, 1], [], []>} : vector<8x72xbf16>, vector<72x128xbf16>, vector<8x128xf32> -> vector<8x128xf32>
    %c0_3 = arith.constant 0 : index
    %c0_4 = arith.constant 0 : index
    %3 = vector.load %arg3[%c0_3, %c0_4] : memref<8x1xf32, #tpu.memory_space<vmem>>, vector<8x1xf32>
    %4 = vector.broadcast %3 : vector<8x1xf32> to vector<8x128xf32>
    %5 = arith.mulf %2, %4 : vector<8x128xf32>
    %c0_5 = arith.constant 0 : index
    %c0_6 = arith.constant 0 : index
    %6 = vector.load %arg4[%c0_5, %c0_6] : memref<8x1xf32, #tpu.memory_space<vmem>>, vector<8x1xf32>
    %7 = vector.broadcast %6 : vector<8x1xf32> to vector<8x128xf32>
    %8 = arith.addf %5, %7 : vector<8x128xf32>
    %cst_7 = arith.constant 0.000000e+00 : f32
    %9 = vector.broadcast %cst_7 : f32 to vector<8x128xf32>
    %10 = arith.maximumf %8, %9 : vector<8x128xf32>
    %11 = arith.truncf %10 : vector<8x128xf32> to vector<8x128xbf16>
    %c0_8 = arith.constant 0 : index
    %c0_9 = arith.constant 0 : index
    %12 = vector.load %arg5[%c0_8, %c0_9] : memref<8x128xbf16, #tpu.memory_space<vmem>>, vector<8x128xbf16>
    tpu.vector_store %arg5[%c0_8, %c0_9], %11 {strides = array<i32>} : memref<8x128xbf16, #tpu.memory_space<vmem>>, vector<8x128xbf16>,
    return
  }
  func.func @transform_0(%arg0: i32) -> (i32, i32) {
    %c0_i32 = arith.constant 0 : i32
    %c0_i32_0 = arith.constant 0 : i32
    return %c0_i32, %arg0 : i32, i32
  }
  func.func @transform_1(%arg0: i32) -> (i32, i32) {
    %c0_i32 = arith.constant 0 : i32
    %c0_i32_0 = arith.constant 0 : i32
    %c0_i32_1 = arith.constant 0 : i32
    return %c0_i32, %c0_i32_0 : i32, i32
  }
  func.func @transform_2(%arg0: i32) -> (i32, i32) {
    %c0_i32 = arith.constant 0 : i32
    %c0_i32_0 = arith.constant 0 : i32
    %c0_i32_1 = arith.constant 0 : i32
    return %c0_i32, %c0_i32_0 : i32, i32
  }
  func.func @transform_3(%arg0: i32) -> (i32, i32) {
    %c0_i32 = arith.constant 0 : i32
    %c0_i32_0 = arith.constant 0 : i32
    %c0_i32_1 = arith.constant 0 : i32
    return %c0_i32, %c0_i32_0 : i32, i32
  }
  func.func @transform_4(%arg0: i32) -> (i32, i32) {
    %c0_i32 = arith.constant 0 : i32
    %c0_i32_0 = arith.constant 0 : i32
    return %c0_i32, %arg0 : i32, i32
  }
}

module attributes {stable_mosaic.version = 11 : i64} {
  func.func @_fused_conv_kernel(%arg0: i32, %arg1: memref<72x128xbf16, #tpu.memory_space<vmem>>, %arg2: memref<8x72xbf16, #tpu.memory_space<vmem>>, %arg3: memref<8x128xf32, #tpu.memory_space<vmem>>, %arg4: memref<8x128xf32, #tpu.memory_space<vmem>>) attributes {dimension_semantics = [#tpu.dimension_semantics<parallel>], iteration_bounds = array<i64: 1>, scalar_prefetch = 0 : i64, scratch_operands = 0 : i64, tpu.core_type = #tpu.core_type<tc>, window_params = [{transform_indices = @transform_0, window_bounds = array<i64: 72, 128>}, {pipeline_mode = #tpu.pipeline_mode<synchronous>, transform_indices = @transform_1, window_bounds = array<i64: 8, 72>}, {transform_indices = @transform_2, window_bounds = array<i64: 8, 128>}, {transform_indices = @transform_3, window_bounds = array<i64: 8, 128>}]} {
    %c0 = arith.constant 0 : index
    %c0_0 = arith.constant 0 : index
    %0 = vector.load %arg1[%c0, %c0_0] : memref<72x128xbf16, #tpu.memory_space<vmem>>, vector<72x128xbf16>
    %c0_1 = arith.constant 0 : index
    %c0_2 = arith.constant 0 : index
    %1 = vector.load %arg2[%c0_1, %c0_2] : memref<8x72xbf16, #tpu.memory_space<vmem>>, vector<8x72xbf16>
    %cst = arith.constant dense<0.000000e+00> : vector<8x128xf32>
    %2 = tpu.matmul %1, %0, %cst {dimension_numbers = #tpu.dot_dimension_numbers<[1], [0], [0], [1], [0, 0, 1, 1], [], []>} : vector<8x72xbf16>, vector<72x128xbf16>, vector<8x128xf32> -> vector<8x128xf32>
    %c0_3 = arith.constant 0 : index
    %c0_4 = arith.constant 0 : index
    %3 = vector.load %arg3[%c0_3, %c0_4] : memref<8x128xf32, #tpu.memory_space<vmem>>, vector<8x128xf32>
    %4 = arith.addf %2, %3 : vector<8x128xf32>
    %c0_5 = arith.constant 0 : index
    %c0_6 = arith.constant 0 : index
    %5 = vector.load %arg4[%c0_5, %c0_6] : memref<8x128xf32, #tpu.memory_space<vmem>>, vector<8x128xf32>
    tpu.vector_store %arg4[%c0_5, %c0_6], %4 {strides = array<i32>} : memref<8x128xf32, #tpu.memory_space<vmem>>, vector<8x128xf32>,
    return
  }
  func.func @transform_0(%arg0: i32) -> (i32, i32) {
    %c0_i32 = arith.constant 0 : i32
    %c0_i32_0 = arith.constant 0 : i32
    return %c0_i32, %arg0 : i32, i32
  }
  func.func @transform_1(%arg0: i32) -> (i32, i32) {
    %c0_i32 = arith.constant 0 : i32
    %c0_i32_0 = arith.constant 0 : i32
    %c0_i32_1 = arith.constant 0 : i32
    return %c0_i32, %c0_i32_0 : i32, i32
  }
  func.func @transform_2(%arg0: i32) -> (i32, i32) {
    %c0_i32 = arith.constant 0 : i32
    %c0_i32_0 = arith.constant 0 : i32
    return %c0_i32, %arg0 : i32, i32
  }
  func.func @transform_3(%arg0: i32) -> (i32, i32) {
    %c0_i32 = arith.constant 0 : i32
    %c0_i32_0 = arith.constant 0 : i32
    return %c0_i32, %arg0 : i32, i32
  }
}

</mosaic_0001>

<llo_original>
// kernel: network_block_forward.6
$region0: #{network_block_forward.6}
  #allocation0 [shape = 'u32[]', space=smem, size = 0x4, offset = 0x4, fixed_abs, tag = 'smem constant byte address 0x4 - core index']
  #allocation1 [shape = 'u32[144,128]{1,0:T(1,128)}', space=vmem, size = 0x12000, scoped, tag = 'internal scratch']
  %s0 = inlined_call_operand.vmem [shape: f32[4,512], index: 0, kind: input, shape index: {}]
  %s1 = inlined_call_operand.vmem [shape: f32[4,1], index: 1, kind: input, shape index: {}]
  %s2 = inlined_call_operand.vmem [shape: f32[4,1], index: 2, kind: input, shape index: {}]
  %s3 = inlined_call_operand.vmem [shape: bf16[4,512], index: 3, kind: output, shape index: {}]
  %s4 = sld [smem:[#allocation0]]
  $region45: #{network_block_forward.6} parent=0
    _
  %s6 = ssub.s32 1, %s4
  %s7 = scalar_select 0, %s6, %s4
  loop: start=0, step=1, limit=4
  $region2: #{network_block_forward.6} parent=0 // loop_pre_header
    _
  $region3: #{network_block_forward.6} parent=0 // loop_header
    %s9 = sphi 0, %s13
    %p10 = scmp.ge.s32.totalorder %s9, 4
    %s19 = sphi 0, %s21
    %s22 = sphi 0, %s19
    %s23 = sphi 0, %s22
    %s39 = sphi 0, %s23
    %s43 = sphi 0, %s43
    %s45 = sphi 0, %s43
    %s46 = sphi 0, %s45
    %s60 = sphi 0, %s46
    %s64 = sphi 0, %s64
    %s66 = sphi 0, %s64
    %s67 = sphi 0, %s66
    %s81 = sphi 0, %s67
    %s87 = sphi 0, %s89
    %s90 = sphi 0, %s87
    %s91 = sphi 0, %s90
    %s107 = sphi 0, %s91
  $region4: #{network_block_forward.6} parent=0 // loop_header_branch
    %12 = sbr.rel (%p10) target = $region8
  $region5: #{network_block_forward.6} parent=0 // loop_body
    %s14 = ssub.s32 %s9, 1
    %s15 = ssub.s32 %s9, 2
    %s16 = sadd.s32 %s9, 1
    %s17 = ssub.s32 %s9, %s16
    %p18 = scmp.eq.s32.totalorder %s17, 0
    %s20 = sadd.s32 %s19, 1
    %s21 = scalar_select %p18, %s19, %s20
    %p24 = pneg %p18
    %p25 = scmp.eq.s32.totalorder %s9, 1
    %p26 = por %p24, %p25
    %p27 = scmp.ne.s32.totalorder %s19, %s22
    %p28 = scmp.eq.s32.totalorder %s9, 0
    %p29 = por %p27, %p28
    %p30 = scmp.ne.s32.totalorder %s19, %s22
    %p31 = scmp.eq.s32.totalorder %s14, 1
    %p32 = por %p30, %p31
    %p33 = scmp.ne.s32.totalorder %s22, %s23
    %p34 = scmp.eq.s32.totalorder %s14, 0
    %p35 = por %p33, %p34
    %p36 = scmp.ne.s32.totalorder %s22, %s23
    %p37 = scmp.eq.s32.totalorder %s15, 1
    %p38 = por %p36, %p37
    %p40 = scmp.ne.s32.totalorder %s23, %s39
    %p41 = scmp.eq.s32.totalorder %s15, 0
    %p42 = por %p40, %p41
    %s44 = sadd.s32 %s43, 1
    %p47 = scmp.eq.s32.totalorder %s9, 1
    %p48 = scmp.ne.s32.totalorder %s43, %s45
    %p49 = scmp.eq.s32.totalorder %s9, 0
    %p50 = por %p48, %p49
    %p51 = scmp.ne.s32.totalorder %s43, %s45
    %p52 = scmp.eq.s32.totalorder %s14, 1
    %p53 = por %p51, %p52
    %p54 = scmp.ne.s32.totalorder %s45, %s46
    %p55 = scmp.eq.s32.totalorder %s14, 0
    %p56 = por %p54, %p55
    %p57 = scmp.ne.s32.totalorder %s45, %s46
    %p58 = scmp.eq.s32.totalorder %s15, 1
    %p59 = por %p57, %p58
    %p61 = scmp.ne.s32.totalorder %s46, %s60
    %p62 = scmp.eq.s32.totalorder %s15, 0
    %p63 = por %p61, %p62
    %s65 = sadd.s32 %s64, 1
    %p68 = scmp.eq.s32.totalorder %s9, 1
    %p69 = scmp.ne.s32.totalorder %s64, %s66
    %p70 = scmp.eq.s32.totalorder %s9, 0
    %p71 = por %p69, %p70
    %p72 = scmp.ne.s32.totalorder %s64, %s66
    %p73 = scmp.eq.s32.totalorder %s14, 1
    %p74 = por %p72, %p73
    %p75 = scmp.ne.s32.totalorder %s66, %s67
    %p76 = scmp.eq.s32.totalorder %s14, 0
    %p77 = por %p75, %p76
    %p78 = scmp.ne.s32.totalorder %s66, %s67
    %p79 = scmp.eq.s32.totalorder %s15, 1
    %p80 = por %p78, %p79
    %p82 = scmp.ne.s32.totalorder %s67, %s81
    %p83 = scmp.eq.s32.totalorder %s15, 0
    %p84 = por %p82, %p83
    %s85 = ssub.s32 %s9, %s16
    %p86 = scmp.eq.s32.totalorder %s85, 0
    %s88 = sadd.s32 %s87, 1
    %s89 = scalar_select %p86, %s87, %s88
    %p92 = pneg %p86
    %p93 = scmp.eq.s32.totalorder %s9, 1
    %p94 = por %p92, %p93
    %p95 = scmp.ne.s32.totalorder %s87, %s90
    %p96 = scmp.eq.s32.totalorder %s9, 0
    %p97 = por %p95, %p96
    %p98 = scmp.ne.s32.totalorder %s87, %s90
    %p99 = scmp.eq.s32.totalorder %s14, 1
    %p100 = por %p98, %p99
    %p101 = scmp.ne.s32.totalorder %s90, %s91
    %p102 = scmp.eq.s32.totalorder %s14, 0
    %p103 = por %p101, %p102
    %p104 = scmp.ne.s32.totalorder %s90, %s91
    %p105 = scmp.eq.s32.totalorder %s15, 1
    %p106 = por %p104, %p105
    %p108 = scmp.ne.s32.totalorder %s91, %s107
    %p109 = scmp.eq.s32.totalorder %s15, 0
    %p110 = por %p108, %p109
    %p111 = scmp.le.s32.totalorder 1, %s9
    %p112 = scmp.lt.s32.totalorder %s9, 3
    %p113 = pnand %p111, %p112
    %p114 = pneg %p113
    // Predicated region
    $region9: #{network_block_forward.6} parent=5 // pred_check
      _
    $region10: #{network_block_forward.6} parent=5 // pred_check_branch
      %116 = sbr.rel (%p113) target = $region12
    $region11: #{network_block_forward.6} parent=5 // pred_region
      %s117 = ssub.s32 %s9, 1
      // Predicated region
      $region13: #{network_block_forward.6} parent=11 // pred_check
        %p118 = pneg %p56
      $region14: #{network_block_forward.6} parent=11 // pred_check_branch
        %120 = sbr.rel (%p118) target = $region16
      $region15: #{network_block_forward.6} parent=11 // pred_region
        _
      $region16: #{network_block_forward.6} parent=11 // pred_fallthru
        _
      // Predicated region
      $region17: #{network_block_forward.6} parent=11 // pred_check
        %p121 = pneg %p77
      $region18: #{network_block_forward.6} parent=11 // pred_check_branch
        %123 = sbr.rel (%p121) target = $region20
      $region19: #{network_block_forward.6} parent=11 // pred_region
        _
      $region20: #{network_block_forward.6} parent=11 // pred_fallthru
        _
    $region12: #{network_block_forward.6} parent=5 // pred_fallthru
      _
    %p124 = scmp.lt.s32.totalorder %s9, 2
    // Predicated region
    $region21: #{network_block_forward.6} parent=5 // pred_check
      %p125 = pneg %p124
    $region22: #{network_block_forward.6} parent=5 // pred_check_branch
      %127 = sbr.rel (%p125) target = $region24
    $region23: #{network_block_forward.6} parent=5 // pred_region
      // Predicated region
      $region25: #{network_block_forward.6} parent=23 // pred_check
        %p128 = pneg %p29
      $region26: #{network_block_forward.6} parent=23 // pred_check_branch
        %130 = sbr.rel (%p128) target = $region28
      $region27: #{network_block_forward.6} parent=23 // pred_region
        %s131 = smul.u32 2, %s9
        %p132 = scmp.lt.s32.totalorder %s131, 3
        %s133 = scalar_select %p132, %s131, 3
        %s134 = smul.addr %s133, 4
        %s135 = scalar_lea.vmem %s0, %s134
        %s136 = smul.u32 2, %s9
      $region28: #{network_block_forward.6} parent=23 // pred_fallthru
        _
    $region24: #{network_block_forward.6} parent=5 // pred_fallthru
      _
    %p137 = scmp.le.s32.totalorder 1, %s9
    %p138 = scmp.lt.s32.totalorder %s9, 3
    %p139 = pnand %p137, %p138
    %p140 = pneg %p139
    // Predicated region
    $region29: #{network_block_forward.6} parent=5 // pred_check
      _
    $region30: #{network_block_forward.6} parent=5 // pred_check_branch
      %142 = sbr.rel (%p139) target = $region32
    $region31: #{network_block_forward.6} parent=5 // pred_region
      %s143 = ssub.s32 %s9, 1
      %s144 = smul.u32 2, %s14
      %p145 = scmp.lt.s32.totalorder %s144, 3
      %s146 = scalar_select %p145, %s144, 3
      %s147 = smul.addr %s146, 4
      %s148 = scalar_lea.vmem %s0, %s147
      %p149 = pneg %p35
      %p150 = pneg %p32
      %p151 = pneg %p56
      %p152 = pneg %p53
      %p153 = pneg %p77
      %p154 = pneg %p74
      %p155 = pneg %p103
      %p156 = pneg %p100
      %s157 = smul.u32 2, %s14
      %p158 = scmp.lt.s32.totalorder %s157, 3
      %s159 = scalar_select %p158, %s157, 3
      %s160 = smul.addr %s159, 2
      %s161 = scalar_lea.vmem %s3, %s160
      %s162 = smul.u32 2, %s14
      %p163 = scmp.lt.s32.totalorder %s162, 3
      %s164 = scalar_select %p163, %s162, 3
      %s165 = smul.addr %s164, 4
      %s166 = scalar_lea.vmem %s0, %s165
      %s167 = smul.u32 2, %s14
      %s168 = smul.u32 2, %s14
      %p169 = scmp.lt.s32.totalorder %s168, 3
      %s170 = scalar_select %p169, %s168, 3
      %s171 = smul.addr %s170, 2
      %s172 = scalar_lea.vmem %s3, %s171
      %s173 = smul.u32 2, %s14
      %v174 = vld [vmem:[%s166] sm:$0xff]
      %v175 = vld [vmem:[%s1] sm:$0xf]
      %177 = vset.pattern.permute.xlu0 0
      %178 = vperm.xlu0 %177, %v175
      %v179 = vpop.permute.xlu0 %178
      %v181 = vunpack.c.l.s4 839922192
      %v182 = vunpack.c.0.s8 %v181
      %v183 = vlaneseq
      %v184 = vshrl.u32 %v183, 7
      %v185 = vsub.s32 %v182, %v184
      %v186 = vrot.slane %v179, %v185
      %v188 = vmul.f32 %v174, %v186
      %v189 = vld [vmem:[%s2] sm:$0xf]
      %191 = vset.pattern.permute.xlu0 0
      %192 = vperm.xlu0 %191, %v189
      %v193 = vpop.permute.xlu0 %192
      %v195 = vunpack.c.l.s4 839922192
      %v196 = vunpack.c.0.s8 %v195
      %v197 = vlaneseq
      %v198 = vshrl.u32 %v197, 7
      %v199 = vsub.s32 %v196, %v198
      %v200 = vrot.slane %v193, %v199
      %v202 = vadd.f32 %v188, %v200
      %v203 = vmax.f32 %v202, 0.0
      %v205 = vcombine.high %v203, %v203
      %v207 = vpack.c.bf16 %v203, %v203
      %v208 = vpack.c.bf16 %v205, %v205
      %v211 = vcombine.low %v207, %v208
      %v213 = vunpack.c.l.s4 1983009808
      %v214 = vunpack.c.0.s8 %v213
      %v215 = vlaneseq
      %v216 = vshrl.u32 %v215, 7
      %v217 = vsub.s32 %v214, %v216
      %v218 = vrot.slane %v211, %v217
      %220 = vst [vmem:[%s172] sm:$0xf] %v218
      %s221 = smul.u32 2, %s14
      %p222 = scmp.lt.s32.totalorder %s221, 3
      %s223 = scalar_select %p222, %s221, 3
      %s224 = smul.addr %s223, 2
      %s225 = scalar_lea.vmem %s3, %s224
      // Predicated region
      $region33: #{network_block_forward.6} parent=31 // pred_check
        %p226 = pneg %p100
      $region34: #{network_block_forward.6} parent=31 // pred_check_branch
        %228 = sbr.rel (%p226) target = $region36
      $region35: #{network_block_forward.6} parent=31 // pred_region
        %s229 = smul.u32 2, %s14
      $region36: #{network_block_forward.6} parent=31 // pred_fallthru
        _
    $region32: #{network_block_forward.6} parent=5 // pred_fallthru
      _
    %p230 = scmp.le.s32.totalorder 2, %s9
    // Predicated region
    $region37: #{network_block_forward.6} parent=5 // pred_check
      %p231 = pneg %p230
    $region38: #{network_block_forward.6} parent=5 // pred_check_branch
      %233 = sbr.rel (%p231) target = $region40
    $region39: #{network_block_forward.6} parent=5 // pred_region
      %s234 = ssub.s32 %s9, 2
      // Predicated region
      $region41: #{network_block_forward.6} parent=39 // pred_check
        %p235 = pneg %p106
      $region42: #{network_block_forward.6} parent=39 // pred_check_branch
        %237 = sbr.rel (%p235) target = $region44
      $region43: #{network_block_forward.6} parent=39 // pred_region
        %s238 = smul.u32 2, %s15
        %p239 = scmp.lt.s32.totalorder %s238, 3
        %s240 = scalar_select %p239, %s238, 3
        %s241 = smul.addr %s240, 2
        %s242 = scalar_lea.vmem %s3, %s241
      $region44: #{network_block_forward.6} parent=39 // pred_fallthru
        _
    $region40: #{network_block_forward.6} parent=5 // pred_fallthru
      _
  $region6: #{network_block_forward.6} parent=0 // loop_footer
    %s13 = sadd.s32 1, %s9
  $region7: #{network_block_forward.6} parent=0 // loop_footer_branch
    %8 = sbr.rel target = $region3
  $region8: #{network_block_forward.6} parent=0 // loop_exit
    _

// kernel: network_block_forward.7
$region0: #{network_block_forward.7}
  #allocation0 [shape = 'u32[]', space=smem, size = 0x4, offset = 0x4, fixed_abs, tag = 'smem constant byte address 0x4 - core index']
  #allocation1 [shape = 'u32[144,128]{1,0:T(1,128)}', space=vmem, size = 0x12000, scoped, tag = 'internal scratch']
  %s0 = inlined_call_operand.vmem [shape: bf16[36,128], index: 0, kind: input, shape index: {}]
  %s1 = inlined_call_operand.vmem [shape: bf16[8,36], index: 1, kind: input, shape index: {}]
  %s2 = inlined_call_operand.vmem [shape: f32[8,1], index: 2, kind: input, shape index: {}]
  %s3 = inlined_call_operand.vmem [shape: f32[8,1], index: 3, kind: input, shape index: {}]
  %s4 = inlined_call_operand.vmem [shape: bf16[8,4], index: 4, kind: input, shape index: {}]
  %s5 = inlined_call_operand.vmem [shape: bf16[8,128], index: 5, kind: output, shape index: {0}]
  %s6 = inlined_call_operand.vmem [shape: bf16[8,128], index: 6, kind: output, shape index: {1}]
  %7 = xla_tuple %s5, %s6
  %s8 = sld [smem:[#allocation0]]
  $region38: #{network_block_forward.7} parent=0
    _
  %s10 = ssub.s32 1, %s8
  %s11 = scalar_select 0, %s10, %s8
  // Predicated region
  $region2: #{network_block_forward.7} parent=0 // pred_check
    _
  $region3: #{network_block_forward.7} parent=0 // pred_check_branch
    %13 = sbr.rel (0) target = $region5
  $region4: #{network_block_forward.7} parent=0 // pred_region
    _
  $region5: #{network_block_forward.7} parent=0 // pred_fallthru
    _
  // Predicated region
  $region6: #{network_block_forward.7} parent=0 // pred_check
    _
  $region7: #{network_block_forward.7} parent=0 // pred_check_branch
    %15 = sbr.rel (0) target = $region9
  $region8: #{network_block_forward.7} parent=0 // pred_region
    _
  $region9: #{network_block_forward.7} parent=0 // pred_fallthru
    _
  // Predicated region
  $region10: #{network_block_forward.7} parent=0 // pred_check
    _
  $region11: #{network_block_forward.7} parent=0 // pred_check_branch
    %17 = sbr.rel (0) target = $region13
  $region12: #{network_block_forward.7} parent=0 // pred_region
    _
  $region13: #{network_block_forward.7} parent=0 // pred_fallthru
    _
  // Predicated region
  $region14: #{network_block_forward.7} parent=0 // pred_check
    _
  $region15: #{network_block_forward.7} parent=0 // pred_check_branch
    %19 = sbr.rel (0) target = $region17
  $region16: #{network_block_forward.7} parent=0 // pred_region
    _
  $region17: #{network_block_forward.7} parent=0 // pred_fallthru
    _
  // Predicated region
  $region18: #{network_block_forward.7} parent=0 // pred_check
    _
  $region19: #{network_block_forward.7} parent=0 // pred_check_branch
    %21 = sbr.rel (0) target = $region21
  $region20: #{network_block_forward.7} parent=0 // pred_region
    _
  $region21: #{network_block_forward.7} parent=0 // pred_fallthru
    _
  %v23 = vld [vmem:[%s0] sm:$0xf]
  %v24 = vld [vmem:[%s0 + $0x4] sm:$0xf]
  %v25 = vld [vmem:[%s0 + $0x8] sm:$0xf]
  %v26 = vld [vmem:[%s0 + $0xc] sm:$0xf]
  %v27 = vld [vmem:[%s0 + $0x10] sm:$0x3]
  %v28 = vld [vmem:[%s1] sm:$0xf]
  %v34 = vunpack.c.l.b16 %v23
  %v35 = vunpack.c.l.b16 %v24
  %v36 = vunpack.c.l.b16 %v25
  %v37 = vunpack.c.l.b16 %v26
  %v38 = vunpack.c.l.b16 %v27
  %v39 = vpack.c.b16 %v35, %v34
  %v40 = vpack.c.b16 %v37, %v36
  %v41 = vpack.c.b16 %v38, %v38
  %vm44 = vcmask 293888
  %v46 = vsel %vm44, %v28, 0
  %vm48 = vcmask 1041408
  %v50 = vsel %vm48, %v41, 0
  %52 = vmatprep.subr.bf16.mxu0 0
  %53 = vmatpush1.bf16.msra.mxu0 %v39
  %54 = vmatprep.subr.bf16.mxu0 0
  %55 = vmatpush1.bf16.msra.mxu0 %v40
  %56 = vmatprep.subr.bf16.mxu0 0
  %57 = vmatpush1.bf16.msra.mxu0 %v50
  %58 = vmatprep.subr.bf16.mxu0 0
  %59 = vmatpush1.bf16.msra.mxu0 0
  %60 = vmatprep.subr.bf16.mxu0 0
  %61 = vmatpush1.bf16.msra.mxu0 0
  %62 = vmatprep.subr.bf16.mxu0 0
  %63 = vmatpush1.bf16.msra.mxu0 0
  %64 = vmatprep.subr.bf16.mxu0 0
  %65 = vmatpush1.bf16.msra.mxu0 0
  %66 = vmatprep.subr.bf16.mxu0 0
  %67 = vmatpush1.bf16.msra.mxu0 0
  %68 = vmatprep.subr.bf16.mxu0 0
  %69 = vmatpush1.bf16.msra.mxu0 0
  %70 = vmatprep.subr.bf16.mxu0 0
  %71 = vmatpush1.bf16.msra.mxu0 0
  %72 = vmatprep.subr.bf16.mxu0 0
  %73 = vmatpush1.bf16.msra.mxu0 0
  %74 = vmatprep.subr.bf16.mxu0 0
  %75 = vmatpush1.bf16.msra.mxu0 0
  %76 = vmatprep.subr.bf16.mxu0 0
  %77 = vmatpush1.bf16.msra.mxu0 0
  %78 = vmatprep.subr.bf16.mxu0 0
  %79 = vmatpush1.bf16.msra.mxu0 0
  %80 = vmatprep.subr.bf16.mxu0 0
  %81 = vmatpush1.bf16.msra.mxu0 0
  %82 = vmatprep.subr.bf16.mxu0 0
  %83 = vmatpush1.bf16.msra.mxu0 0
  %84 = vmatprep.mubr.bf16.mxu0 0
  %85 = vmatmul.mubr.bf16.gmra.mrb[0].mxu0 %v46
  %v86 = vpop.f32.mrb[0].mxu0
  %v87 = vadd.f32 0.0, %v86
  %v88 = vpop.f32.mrb[0].mxu0
  %v89 = vpop.f32.mrb[0].mxu0
  %v90 = vpop.f32.mrb[0].mxu0
  %91 = vdwg.mxu0
  %v92 = vld [vmem:[%s2] sm:$0xff]
  %94 = vset.pattern.permute.xlu0 0
  %95 = vperm.xlu0 %94, %v92
  %v96 = vpop.permute.xlu0 %95
  %v98 = vmul.f32 %v87, %v96
  %v99 = vld [vmem:[%s3] sm:$0xff]
  %101 = vset.pattern.permute.xlu0 0
  %102 = vperm.xlu0 %101, %v99
  %v103 = vpop.permute.xlu0 %102
  %v105 = vadd.f32 %v98, %v103
  %v106 = vmax.f32 %v105, 0.0
  %v107 = vpack.c.bf16 %v106, %v106
  %108 = vst [vmem:[%s5] sm:$0xf] %v107
  %v109 = vld [vmem:[%s4] sm:$0xf]
  %vm110 = vcmask 31744
  %v112 = vsel %vm110, %v109, 0
  %v115 = vsel %vm48, %v25, 0
  %117 = vmatprep.subr.bf16.mxu0 0
  %118 = vmatpush1.bf16.msra.mxu0 %v115
  %119 = vmatprep.subr.bf16.mxu0 0
  %120 = vmatpush1.bf16.msra.mxu0 0
  %121 = vmatprep.subr.bf16.mxu0 0
  %122 = vmatpush1.bf16.msra.mxu0 0
  %123 = vmatprep.subr.bf16.mxu0 0
  %124 = vmatpush1.bf16.msra.mxu0 0
  %125 = vmatprep.subr.bf16.mxu0 0
  %126 = vmatpush1.bf16.msra.mxu0 0
  %127 = vmatprep.subr.bf16.mxu0 0
  %128 = vmatpush1.bf16.msra.mxu0 0
  %129 = vmatprep.subr.bf16.mxu0 0
  %130 = vmatpush1.bf16.msra.mxu0 0
  %131 = vmatprep.subr.bf16.mxu0 0
  %132 = vmatpush1.bf16.msra.mxu0 0
  %133 = vmatprep.subr.bf16.mxu0 0
  %134 = vmatpush1.bf16.msra.mxu0 0
  %135 = vmatprep.subr.bf16.mxu0 0
  %136 = vmatpush1.bf16.msra.mxu0 0
  %137 = vmatprep.subr.bf16.mxu0 0
  %138 = vmatpush1.bf16.msra.mxu0 0
  %139 = vmatprep.subr.bf16.mxu0 0
  %140 = vmatpush1.bf16.msra.mxu0 0
  %141 = vmatprep.subr.bf16.mxu0 0
  %142 = vmatpush1.bf16.msra.mxu0 0
  %143 = vmatprep.subr.bf16.mxu0 0
  %144 = vmatpush1.bf16.msra.mxu0 0
  %145 = vmatprep.subr.bf16.mxu0 0
  %146 = vmatpush1.bf16.msra.mxu0 0
  %147 = vmatprep.subr.bf16.mxu0 0
  %148 = vmatpush1.bf16.msra.mxu0 0
  %149 = vmatprep.mubr.bf16.mxu0 0
  %150 = vmatmul.mubr.bf16.gmra.mrb[0].mxu0 %v112
  %v151 = vpop.f32.mrb[0].mxu0
  %v152 = vadd.f32 0.0, %v151
  %v153 = vpop.f32.mrb[0].mxu0
  %v154 = vpop.f32.mrb[0].mxu0
  %v155 = vpop.f32.mrb[0].mxu0
  %156 = vdwg.mxu0
  %v157 = vpack.c.bf16 %v152, %v152
  %158 = vst [vmem:[%s6] sm:$0xf] %v157
  // Predicated region
  $region22: #{network_block_forward.7} parent=0 // pred_check
    _
  $region23: #{network_block_forward.7} parent=0 // pred_check_branch
    %160 = sbr.rel (0) target = $region25
  $region24: #{network_block_forward.7} parent=0 // pred_region
    _
  $region25: #{network_block_forward.7} parent=0 // pred_fallthru
    _
  // Predicated region
  $region26: #{network_block_forward.7} parent=0 // pred_check
    _
  $region27: #{network_block_forward.7} parent=0 // pred_check_branch
    %162 = sbr.rel (0) target = $region29
  $region28: #{network_block_forward.7} parent=0 // pred_region
    _
  $region29: #{network_block_forward.7} parent=0 // pred_fallthru
    _
  // Predicated region
  $region30: #{network_block_forward.7} parent=0 // pred_check
    _
  $region31: #{network_block_forward.7} parent=0 // pred_check_branch
    %164 = sbr.rel (0) target = $region33
  $region32: #{network_block_forward.7} parent=0 // pred_region
    _
  $region33: #{network_block_forward.7} parent=0 // pred_fallthru
    _
  // Predicated region
  $region34: #{network_block_forward.7} parent=0 // pred_check
    _
  $region35: #{network_block_forward.7} parent=0 // pred_check_branch
    %166 = sbr.rel (0) target = $region37
  $region36: #{network_block_forward.7} parent=0 // pred_region
    _
  $region37: #{network_block_forward.7} parent=0 // pred_fallthru
    _

// kernel: network_block_forward.8
$region0: #{network_block_forward.8}
  #allocation0 [shape = 'u32[]', space=smem, size = 0x4, offset = 0x4, fixed_abs, tag = 'smem constant byte address 0x4 - core index']
  #allocation1 [shape = 'u32[144,128]{1,0:T(1,128)}', space=vmem, size = 0x12000, scoped, tag = 'internal scratch']
  %s0 = inlined_call_operand.vmem [shape: bf16[72,128], index: 0, kind: input, shape index: {}]
  %s1 = inlined_call_operand.vmem [shape: bf16[8,72], index: 1, kind: input, shape index: {}]
  %s2 = inlined_call_operand.vmem [shape: bf16[8,128], index: 2, kind: input, shape index: {}]
  %s3 = inlined_call_operand.vmem [shape: f32[8,128], index: 3, kind: output, shape index: {}]
  %s4 = sld [smem:[#allocation0]]
  $region22: #{network_block_forward.8} parent=0
    _
  %s6 = ssub.s32 1, %s4
  %s7 = scalar_select 0, %s6, %s4
  // Predicated region
  $region2: #{network_block_forward.8} parent=0 // pred_check
    _
  $region3: #{network_block_forward.8} parent=0 // pred_check_branch
    %9 = sbr.rel (0) target = $region5
  $region4: #{network_block_forward.8} parent=0 // pred_region
    _
  $region5: #{network_block_forward.8} parent=0 // pred_fallthru
    _
  // Predicated region
  $region6: #{network_block_forward.8} parent=0 // pred_check
    _
  $region7: #{network_block_forward.8} parent=0 // pred_check_branch
    %11 = sbr.rel (0) target = $region9
  $region8: #{network_block_forward.8} parent=0 // pred_region
    _
  $region9: #{network_block_forward.8} parent=0 // pred_fallthru
    _
  // Predicated region
  $region10: #{network_block_forward.8} parent=0 // pred_check
    _
  $region11: #{network_block_forward.8} parent=0 // pred_check_branch
    %13 = sbr.rel (0) target = $region13
  $region12: #{network_block_forward.8} parent=0 // pred_region
    _
  $region13: #{network_block_forward.8} parent=0 // pred_fallthru
    _
  %v15 = vld [vmem:[%s0] sm:$0xf]
  %v16 = vld [vmem:[%s0 + $0x4] sm:$0xf]
  %v17 = vld [vmem:[%s0 + $0x8] sm:$0xf]
  %v18 = vld [vmem:[%s0 + $0xc] sm:$0xf]
  %v19 = vld [vmem:[%s0 + $0x10] sm:$0xf]
  %v20 = vld [vmem:[%s0 + $0x14] sm:$0xf]
  %v21 = vld [vmem:[%s0 + $0x18] sm:$0xf]
  %v22 = vld [vmem:[%s0 + $0x1c] sm:$0xf]
  %v23 = vld [vmem:[%s0 + $0x20] sm:$0xf]
  %v24 = vld [vmem:[%s1] sm:$0xf]
  %v25 = vld [vmem:[%s2] sm:$0xf]
  %v26 = vunpack.c.l.bf16 %v25
  %v36 = vunpack.c.l.b16 %v15
  %v37 = vunpack.c.l.b16 %v16
  %v38 = vunpack.c.l.b16 %v17
  %v39 = vunpack.c.l.b16 %v18
  %v40 = vunpack.c.l.b16 %v19
  %v41 = vunpack.c.l.b16 %v20
  %v42 = vunpack.c.l.b16 %v21
  %v43 = vunpack.c.l.b16 %v22
  %v44 = vunpack.c.l.b16 %v23
  %v45 = vpack.c.b16 %v37, %v36
  %v46 = vpack.c.b16 %v39, %v38
  %v47 = vpack.c.b16 %v41, %v40
  %v48 = vpack.c.b16 %v43, %v42
  %v49 = vpack.c.b16 %v44, %v44
  %vm54 = vcmask 588800
  %v56 = vsel %vm54, %v24, 0
  %vm58 = vcmask 1043456
  %v60 = vsel %vm58, %v49, 0
  %62 = vmatprep.subr.bf16.mxu0 0
  %63 = vmatpush1.bf16.msra.mxu0 %v45
  %64 = vmatprep.subr.bf16.mxu0 0
  %65 = vmatpush1.bf16.msra.mxu0 %v46
  %66 = vmatprep.subr.bf16.mxu0 0
  %67 = vmatpush1.bf16.msra.mxu0 %v47
  %68 = vmatprep.subr.bf16.mxu0 0
  %69 = vmatpush1.bf16.msra.mxu0 %v48
  %70 = vmatprep.subr.bf16.mxu0 0
  %71 = vmatpush1.bf16.msra.mxu0 %v60
  %72 = vmatprep.subr.bf16.mxu0 0
  %73 = vmatpush1.bf16.msra.mxu0 0
  %74 = vmatprep.subr.bf16.mxu0 0
  %75 = vmatpush1.bf16.msra.mxu0 0
  %76 = vmatprep.subr.bf16.mxu0 0
  %77 = vmatpush1.bf16.msra.mxu0 0
  %78 = vmatprep.subr.bf16.mxu0 0
  %79 = vmatpush1.bf16.msra.mxu0 0
  %80 = vmatprep.subr.bf16.mxu0 0
  %81 = vmatpush1.bf16.msra.mxu0 0
  %82 = vmatprep.subr.bf16.mxu0 0
  %83 = vmatpush1.bf16.msra.mxu0 0
  %84 = vmatprep.subr.bf16.mxu0 0
  %85 = vmatpush1.bf16.msra.mxu0 0
  %86 = vmatprep.subr.bf16.mxu0 0
  %87 = vmatpush1.bf16.msra.mxu0 0
  %88 = vmatprep.subr.bf16.mxu0 0
  %89 = vmatpush1.bf16.msra.mxu0 0
  %90 = vmatprep.subr.bf16.mxu0 0
  %91 = vmatpush1.bf16.msra.mxu0 0
  %92 = vmatprep.subr.bf16.mxu0 0
  %93 = vmatpush1.bf16.msra.mxu0 0
  %94 = vmatprep.mubr.bf16.mxu0 0
  %95 = vmatmul.mubr.bf16.gmra.mrb[0].mxu0 %v56
  %v96 = vpop.f32.mrb[0].mxu0
  %v97 = vadd.f32 %v26, %v96
  %v98 = vpop.f32.mrb[0].mxu0
  %v99 = vpop.f32.mrb[0].mxu0
  %v100 = vpop.f32.mrb[0].mxu0
  %101 = vdwg.mxu0
  %102 = vst [vmem:[%s3] sm:$0xff] %v97
  // Predicated region
  $region14: #{network_block_forward.8} parent=0 // pred_check
    _
  $region15: #{network_block_forward.8} parent=0 // pred_check_branch
    %104 = sbr.rel (0) target = $region17
  $region16: #{network_block_forward.8} parent=0 // pred_region
    _
  $region17: #{network_block_forward.8} parent=0 // pred_fallthru
    _
  // Predicated region
  $region18: #{network_block_forward.8} parent=0 // pred_check
    _
  $region19: #{network_block_forward.8} parent=0 // pred_check_branch
    %106 = sbr.rel (0) target = $region21
  $region20: #{network_block_forward.8} parent=0 // pred_region
    _
  $region21: #{network_block_forward.8} parent=0 // pred_fallthru
    _

// kernel: network_block_forward.9
$region0: #{network_block_forward.9}
  #allocation0 [shape = 'u32[]', space=smem, size = 0x4, offset = 0x4, fixed_abs, tag = 'smem constant byte address 0x4 - core index']
  #allocation1 [shape = 'u32[144,128]{1,0:T(1,128)}', space=vmem, size = 0x12000, scoped, tag = 'internal scratch']
  %s0 = inlined_call_operand.vmem [shape: f32[8,128], index: 0, kind: input, shape index: {}]
  %s1 = inlined_call_operand.vmem [shape: f32[8,1], index: 1, kind: input, shape index: {}]
  %s2 = inlined_call_operand.vmem [shape: f32[8,1], index: 2, kind: input, shape index: {}]
  %s3 = inlined_call_operand.vmem [shape: bf16[8,128], index: 3, kind: output, shape index: {}]
  %s4 = sld [smem:[#allocation0]]
  $region22: #{network_block_forward.9} parent=0
    _
  %s6 = ssub.s32 1, %s4
  %s7 = scalar_select 0, %s6, %s4
  // Predicated region
  $region2: #{network_block_forward.9} parent=0 // pred_check
    _
  $region3: #{network_block_forward.9} parent=0 // pred_check_branch
    %9 = sbr.rel (0) target = $region5
  $region4: #{network_block_forward.9} parent=0 // pred_region
    _
  $region5: #{network_block_forward.9} parent=0 // pred_fallthru
    _
  // Predicated region
  $region6: #{network_block_forward.9} parent=0 // pred_check
    _
  $region7: #{network_block_forward.9} parent=0 // pred_check_branch
    %11 = sbr.rel (0) target = $region9
  $region8: #{network_block_forward.9} parent=0 // pred_region
    _
  $region9: #{network_block_forward.9} parent=0 // pred_fallthru
    _
  // Predicated region
  $region10: #{network_block_forward.9} parent=0 // pred_check
    _
  $region11: #{network_block_forward.9} parent=0 // pred_check_branch
    %13 = sbr.rel (0) target = $region13
  $region12: #{network_block_forward.9} parent=0 // pred_region
    _
  $region13: #{network_block_forward.9} parent=0 // pred_fallthru
    _
  %v14 = vld [vmem:[%s0] sm:$0xff]
  %v15 = vld [vmem:[%s1] sm:$0xff]
  %17 = vset.pattern.permute.xlu0 0
  %18 = vperm.xlu0 %17, %v15
  %v19 = vpop.permute.xlu0 %18
  %v21 = vmul.f32 %v14, %v19
  %v22 = vld [vmem:[%s2] sm:$0xff]
  %24 = vset.pattern.permute.xlu0 0
  %25 = vperm.xlu0 %24, %v22
  %v26 = vpop.permute.xlu0 %25
  %v28 = vadd.f32 %v21, %v26
  %v29 = vmax.f32 %v28, 0.0
  %v30 = vpack.c.bf16 %v29, %v29
  %31 = vst [vmem:[%s3] sm:$0xf] %v30
  // Predicated region
  $region14: #{network_block_forward.9} parent=0 // pred_check
    _
  $region15: #{network_block_forward.9} parent=0 // pred_check_branch
    %33 = sbr.rel (0) target = $region17
  $region16: #{network_block_forward.9} parent=0 // pred_region
    _
  $region17: #{network_block_forward.9} parent=0 // pred_fallthru
    _
  // Predicated region
  $region18: #{network_block_forward.9} parent=0 // pred_check
    _
  $region19: #{network_block_forward.9} parent=0 // pred_check_branch
    %35 = sbr.rel (0) target = $region21
  $region20: #{network_block_forward.9} parent=0 // pred_region
    _
  $region21: #{network_block_forward.9} parent=0 // pred_fallthru
    _

// kernel: network_block_forward.10
$region0: #{network_block_forward.10}
  #allocation0 [shape = 'u32[]', space=smem, size = 0x4, offset = 0x4, fixed_abs, tag = 'smem constant byte address 0x4 - core index']
  #allocation1 [shape = 'u32[144,128]{1,0:T(1,128)}', space=vmem, size = 0x12000, scoped, tag = 'internal scratch']
  %s0 = inlined_call_operand.vmem [shape: bf16[72,128], index: 0, kind: input, shape index: {}]
  %s1 = inlined_call_operand.vmem [shape: bf16[8,72], index: 1, kind: input, shape index: {}]
  %s2 = inlined_call_operand.vmem [shape: f32[8,1], index: 2, kind: input, shape index: {}]
  %s3 = inlined_call_operand.vmem [shape: f32[8,1], index: 3, kind: input, shape index: {}]
  %s4 = inlined_call_operand.vmem [shape: bf16[8,128], index: 4, kind: output, shape index: {}]
  %s5 = sld [smem:[#allocation0]]
  $region26: #{network_block_forward.10} parent=0
    _
  %s7 = ssub.s32 1, %s5
  %s8 = scalar_select 0, %s7, %s5
  // Predicated region
  $region2: #{network_block_forward.10} parent=0 // pred_check
    _
  $region3: #{network_block_forward.10} parent=0 // pred_check_branch
    %10 = sbr.rel (0) target = $region5
  $region4: #{network_block_forward.10} parent=0 // pred_region
    _
  $region5: #{network_block_forward.10} parent=0 // pred_fallthru
    _
  // Predicated region
  $region6: #{network_block_forward.10} parent=0 // pred_check
    _
  $region7: #{network_block_forward.10} parent=0 // pred_check_branch
    %12 = sbr.rel (0) target = $region9
  $region8: #{network_block_forward.10} parent=0 // pred_region
    _
  $region9: #{network_block_forward.10} parent=0 // pred_fallthru
    _
  // Predicated region
  $region10: #{network_block_forward.10} parent=0 // pred_check
    _
  $region11: #{network_block_forward.10} parent=0 // pred_check_branch
    %14 = sbr.rel (0) target = $region13
  $region12: #{network_block_forward.10} parent=0 // pred_region
    _
  $region13: #{network_block_forward.10} parent=0 // pred_fallthru
    _
  // Predicated region
  $region14: #{network_block_forward.10} parent=0 // pred_check
    _
  $region15: #{network_block_forward.10} parent=0 // pred_check_branch
    %16 = sbr.rel (0) target = $region17
  $region16: #{network_block_forward.10} parent=0 // pred_region
    _
  $region17: #{network_block_forward.10} parent=0 // pred_fallthru
    _
  %v18 = vld [vmem:[%s0] sm:$0xf]
  %v19 = vld [vmem:[%s0 + $0x4] sm:$0xf]
  %v20 = vld [vmem:[%s0 + $0x8] sm:$0xf]
  %v21 = vld [vmem:[%s0 + $0xc] sm:$0xf]
  %v22 = vld [vmem:[%s0 + $0x10] sm:$0xf]
  %v23 = vld [vmem:[%s0 + $0x14] sm:$0xf]
  %v24 = vld [vmem:[%s0 + $0x18] sm:$0xf]
  %v25 = vld [vmem:[%s0 + $0x1c] sm:$0xf]
  %v26 = vld [vmem:[%s0 + $0x20] sm:$0xf]
  %v27 = vld [vmem:[%s1] sm:$0xf]
  %v37 = vunpack.c.l.b16 %v18
  %v38 = vunpack.c.l.b16 %v19
  %v39 = vunpack.c.l.b16 %v20
  %v40 = vunpack.c.l.b16 %v21
  %v41 = vunpack.c.l.b16 %v22
  %v42 = vunpack.c.l.b16 %v23
  %v43 = vunpack.c.l.b16 %v24
  %v44 = vunpack.c.l.b16 %v25
  %v45 = vunpack.c.l.b16 %v26
  %v46 = vpack.c.b16 %v38, %v37
  %v47 = vpack.c.b16 %v40, %v39
  %v48 = vpack.c.b16 %v42, %v41
  %v49 = vpack.c.b16 %v44, %v43
  %v50 = vpack.c.b16 %v45, %v45
  %vm55 = vcmask 588800
  %v57 = vsel %vm55, %v27, 0
  %vm59 = vcmask 1043456
  %v61 = vsel %vm59, %v50, 0
  %63 = vmatprep.subr.bf16.mxu0 0
  %64 = vmatpush1.bf16.msra.mxu0 %v46
  %65 = vmatprep.subr.bf16.mxu0 0
  %66 = vmatpush1.bf16.msra.mxu0 %v47
  %67 = vmatprep.subr.bf16.mxu0 0
  %68 = vmatpush1.bf16.msra.mxu0 %v48
  %69 = vmatprep.subr.bf16.mxu0 0
  %70 = vmatpush1.bf16.msra.mxu0 %v49
  %71 = vmatprep.subr.bf16.mxu0 0
  %72 = vmatpush1.bf16.msra.mxu0 %v61
  %73 = vmatprep.subr.bf16.mxu0 0
  %74 = vmatpush1.bf16.msra.mxu0 0
  %75 = vmatprep.subr.bf16.mxu0 0
  %76 = vmatpush1.bf16.msra.mxu0 0
  %77 = vmatprep.subr.bf16.mxu0 0
  %78 = vmatpush1.bf16.msra.mxu0 0
  %79 = vmatprep.subr.bf16.mxu0 0
  %80 = vmatpush1.bf16.msra.mxu0 0
  %81 = vmatprep.subr.bf16.mxu0 0
  %82 = vmatpush1.bf16.msra.mxu0 0
  %83 = vmatprep.subr.bf16.mxu0 0
  %84 = vmatpush1.bf16.msra.mxu0 0
  %85 = vmatprep.subr.bf16.mxu0 0
  %86 = vmatpush1.bf16.msra.mxu0 0
  %87 = vmatprep.subr.bf16.mxu0 0
  %88 = vmatpush1.bf16.msra.mxu0 0
  %89 = vmatprep.subr.bf16.mxu0 0
  %90 = vmatpush1.bf16.msra.mxu0 0
  %91 = vmatprep.subr.bf16.mxu0 0
  %92 = vmatpush1.bf16.msra.mxu0 0
  %93 = vmatprep.subr.bf16.mxu0 0
  %94 = vmatpush1.bf16.msra.mxu0 0
  %95 = vmatprep.mubr.bf16.mxu0 0
  %96 = vmatmul.mubr.bf16.gmra.mrb[0].mxu0 %v57
  %v97 = vpop.f32.mrb[0].mxu0
  %v98 = vadd.f32 0.0, %v97
  %v99 = vpop.f32.mrb[0].mxu0
  %v100 = vpop.f32.mrb[0].mxu0
  %v101 = vpop.f32.mrb[0].mxu0
  %102 = vdwg.mxu0
  %v103 = vld [vmem:[%s2] sm:$0xff]
  %105 = vset.pattern.permute.xlu0 0
  %106 = vperm.xlu0 %105, %v103
  %v107 = vpop.permute.xlu0 %106
  %v109 = vmul.f32 %v98, %v107
  %v110 = vld [vmem:[%s3] sm:$0xff]
  %112 = vset.pattern.permute.xlu0 0
  %113 = vperm.xlu0 %112, %v110
  %v114 = vpop.permute.xlu0 %113
  %v116 = vadd.f32 %v109, %v114
  %v117 = vmax.f32 %v116, 0.0
  %v118 = vpack.c.bf16 %v117, %v117
  %119 = vst [vmem:[%s4] sm:$0xf] %v118
  // Predicated region
  $region18: #{network_block_forward.10} parent=0 // pred_check
    _
  $region19: #{network_block_forward.10} parent=0 // pred_check_branch
    %121 = sbr.rel (0) target = $region21
  $region20: #{network_block_forward.10} parent=0 // pred_region
    _
  $region21: #{network_block_forward.10} parent=0 // pred_fallthru
    _
  // Predicated region
  $region22: #{network_block_forward.10} parent=0 // pred_check
    _
  $region23: #{network_block_forward.10} parent=0 // pred_check_branch
    %123 = sbr.rel (0) target = $region25
  $region24: #{network_block_forward.10} parent=0 // pred_region
    _
  $region25: #{network_block_forward.10} parent=0 // pred_fallthru
    _

// kernel: network_block_forward.11
$region0: #{network_block_forward.11}
  #allocation0 [shape = 'u32[]', space=smem, size = 0x4, offset = 0x4, fixed_abs, tag = 'smem constant byte address 0x4 - core index']
  #allocation1 [shape = 'u32[144,128]{1,0:T(1,128)}', space=vmem, size = 0x12000, scoped, tag = 'internal scratch']
  %s0 = inlined_call_operand.vmem [shape: bf16[72,128], index: 0, kind: input, shape index: {}]
  %s1 = inlined_call_operand.vmem [shape: bf16[8,72], index: 1, kind: input, shape index: {}]
  %s2 = inlined_call_operand.vmem [shape: f32[8,128], index: 2, kind: input, shape index: {}]
  %s3 = inlined_call_operand.vmem [shape: f32[8,128], index: 3, kind: output, shape index: {}]
  %s4 = sld [smem:[#allocation0]]
  $region22: #{network_block_forward.11} parent=0
    _
  %s6 = ssub.s32 1, %s4
  %s7 = scalar_select 0, %s6, %s4
  // Predicated region
  $region2: #{network_block_forward.11} parent=0 // pred_check
    _
  $region3: #{network_block_forward.11} parent=0 // pred_check_branch
    %9 = sbr.rel (0) target = $region5
  $region4: #{network_block_forward.11} parent=0 // pred_region
    _
  $region5: #{network_block_forward.11} parent=0 // pred_fallthru
    _
  // Predicated region
  $region6: #{network_block_forward.11} parent=0 // pred_check
    _
  $region7: #{network_block_forward.11} parent=0 // pred_check_branch
    %11 = sbr.rel (0) target = $region9
  $region8: #{network_block_forward.11} parent=0 // pred_region
    _
  $region9: #{network_block_forward.11} parent=0 // pred_fallthru
    _
  // Predicated region
  $region10: #{network_block_forward.11} parent=0 // pred_check
    _
  $region11: #{network_block_forward.11} parent=0 // pred_check_branch
    %13 = sbr.rel (0) target = $region13
  $region12: #{network_block_forward.11} parent=0 // pred_region
    _
  $region13: #{network_block_forward.11} parent=0 // pred_fallthru
    _
  %v15 = vld [vmem:[%s0] sm:$0xf]
  %v16 = vld [vmem:[%s0 + $0x4] sm:$0xf]
  %v17 = vld [vmem:[%s0 + $0x8] sm:$0xf]
  %v18 = vld [vmem:[%s0 + $0xc] sm:$0xf]
  %v19 = vld [vmem:[%s0 + $0x10] sm:$0xf]
  %v20 = vld [vmem:[%s0 + $0x14] sm:$0xf]
  %v21 = vld [vmem:[%s0 + $0x18] sm:$0xf]
  %v22 = vld [vmem:[%s0 + $0x1c] sm:$0xf]
  %v23 = vld [vmem:[%s0 + $0x20] sm:$0xf]
  %v24 = vld [vmem:[%s1] sm:$0xf]
  %v25 = vld [vmem:[%s2] sm:$0xff]
  %v35 = vunpack.c.l.b16 %v15
  %v36 = vunpack.c.l.b16 %v16
  %v37 = vunpack.c.l.b16 %v17
  %v38 = vunpack.c.l.b16 %v18
  %v39 = vunpack.c.l.b16 %v19
  %v40 = vunpack.c.l.b16 %v20
  %v41 = vunpack.c.l.b16 %v21
  %v42 = vunpack.c.l.b16 %v22
  %v43 = vunpack.c.l.b16 %v23
  %v44 = vpack.c.b16 %v36, %v35
  %v45 = vpack.c.b16 %v38, %v37
  %v46 = vpack.c.b16 %v40, %v39
  %v47 = vpack.c.b16 %v42, %v41
  %v48 = vpack.c.b16 %v43, %v43
  %vm53 = vcmask 588800
  %v55 = vsel %vm53, %v24, 0
  %vm57 = vcmask 1043456
  %v59 = vsel %vm57, %v48, 0
  %61 = vmatprep.subr.bf16.mxu0 0
  %62 = vmatpush1.bf16.msra.mxu0 %v44
  %63 = vmatprep.subr.bf16.mxu0 0
  %64 = vmatpush1.bf16.msra.mxu0 %v45
  %65 = vmatprep.subr.bf16.mxu0 0
  %66 = vmatpush1.bf16.msra.mxu0 %v46
  %67 = vmatprep.subr.bf16.mxu0 0
  %68 = vmatpush1.bf16.msra.mxu0 %v47
  %69 = vmatprep.subr.bf16.mxu0 0
  %70 = vmatpush1.bf16.msra.mxu0 %v59
  %71 = vmatprep.subr.bf16.mxu0 0
  %72 = vmatpush1.bf16.msra.mxu0 0
  %73 = vmatprep.subr.bf16.mxu0 0
  %74 = vmatpush1.bf16.msra.mxu0 0
  %75 = vmatprep.subr.bf16.mxu0 0
  %76 = vmatpush1.bf16.msra.mxu0 0
  %77 = vmatprep.subr.bf16.mxu0 0
  %78 = vmatpush1.bf16.msra.mxu0 0
  %79 = vmatprep.subr.bf16.mxu0 0
  %80 = vmatpush1.bf16.msra.mxu0 0
  %81 = vmatprep.subr.bf16.mxu0 0
  %82 = vmatpush1.bf16.msra.mxu0 0
  %83 = vmatprep.subr.bf16.mxu0 0
  %84 = vmatpush1.bf16.msra.mxu0 0
  %85 = vmatprep.subr.bf16.mxu0 0
  %86 = vmatpush1.bf16.msra.mxu0 0
  %87 = vmatprep.subr.bf16.mxu0 0
  %88 = vmatpush1.bf16.msra.mxu0 0
  %89 = vmatprep.subr.bf16.mxu0 0
  %90 = vmatpush1.bf16.msra.mxu0 0
  %91 = vmatprep.subr.bf16.mxu0 0
  %92 = vmatpush1.bf16.msra.mxu0 0
  %93 = vmatprep.mubr.bf16.mxu0 0
  %94 = vmatmul.mubr.bf16.gmra.mrb[0].mxu0 %v55
  %v95 = vpop.f32.mrb[0].mxu0
  %v96 = vadd.f32 %v25, %v95
  %v97 = vpop.f32.mrb[0].mxu0
  %v98 = vpop.f32.mrb[0].mxu0
  %v99 = vpop.f32.mrb[0].mxu0
  %100 = vdwg.mxu0
  %101 = vst [vmem:[%s3] sm:$0xff] %v96
  // Predicated region
  $region14: #{network_block_forward.11} parent=0 // pred_check
    _
  $region15: #{network_block_forward.11} parent=0 // pred_check_branch
    %103 = sbr.rel (0) target = $region17
  $region16: #{network_block_forward.11} parent=0 // pred_region
    _
  $region17: #{network_block_forward.11} parent=0 // pred_fallthru
    _
  // Predicated region
  $region18: #{network_block_forward.11} parent=0 // pred_check
    _
  $region19: #{network_block_forward.11} parent=0 // pred_check_branch
    %105 = sbr.rel (0) target = $region21
  $region20: #{network_block_forward.11} parent=0 // pred_region
    _
  $region21: #{network_block_forward.11} parent=0 // pred_fallthru
    _

</llo_original>
